<compile_context>
chip_gen: v7x
topology: tpu7x:2x2x1
jax: 0.10.0
libtpu: 0.0.40
codegen_flags: <defaults>
</compile_context>

<pallas_src>
import jax
import jax.numpy as jnp
from jax.experimental import pallas as pl
from jax.experimental.pallas import tpu as pltpu

BN_EPS = 1e-5


def _ceil_to(v, m):
    return -(-v // m) * m


def mlp_kernel(x_ref,
               w1_ref, c1_ref,
               w2_ref, c2_ref,
               w3_ref, c3_ref,
               w4_ref, c4_ref,
               o_ref):
    """One batch tile of the whole MLP.  BN is pre-folded into w/c."""
    wd = w1_ref.dtype  # bf16 matmul inputs for hidden layers
    x = x_ref[...].astype(wd)
    h = jnp.dot(x, w1_ref[...], preferred_element_type=jnp.float32)
    h = jnp.maximum(h + c1_ref[...], 0.0)
    h = jnp.dot(h.astype(wd), w2_ref[...], preferred_element_type=jnp.float32)
    h = jnp.maximum(h + c2_ref[...], 0.0)
    h = jnp.dot(h.astype(wd), w3_ref[...], preferred_element_type=jnp.float32)
    h = jnp.maximum(h + c3_ref[...], 0.0)
    # Final layer fully in f32: keeps Q-value argmax exact w.r.t. f32 weights.
    o_ref[...] = (jnp.dot(h, w4_ref[...],
                          preferred_element_type=jnp.float32) + c4_ref[...])


def prepare_params(params, weight_dtype=jnp.bfloat16):
    """One-time offline preprocessing: fold BN into w/c, cast hidden weights.

    Input `params` layout (PyTorch-equivalent, eval mode):
      (w1, b1, gamma1, beta1, mean1, var1,
       w2, b2, gamma2, beta2, mean2, var2,
       w3, b3, gamma3, beta3, mean3, var3,
       w4, b4)
    Weights are (in_features, out_features) = transpose of nn.Linear.weight.
    Returns the tuple of arrays consumed directly by the kernel.
    """
    (w1, b1, g1, be1, m1, v1,
     w2, b2, g2, be2, m2, v2,
     w3, b3, g3, be3, m3, v3,
     w4, b4) = params

    def fold(w, b, gamma, beta, mean, var):
        scale = gamma / jnp.sqrt(var + BN_EPS)           # (out,)
        w_f = w * scale[None, :]
        c = (b - mean) * scale + beta
        return w_f, c

    w1f, c1 = fold(w1, b1, g1, be1, m1, v1)
    w2f, c2 = fold(w2, b2, g2, be2, m2, v2)
    w3f, c3 = fold(w3, b3, g3, be3, m3, v3)

    f32 = jnp.float32
    return (
        w1f.astype(weight_dtype), c1.reshape(1, -1).astype(f32),
        w2f.astype(weight_dtype), c2.reshape(1, -1).astype(f32),
        w3f.astype(weight_dtype), c3.reshape(1, -1).astype(f32),
        w4.astype(f32),           b4.reshape(1, -1).astype(f32),
    )


def _batch_tiling(B):
    """Pick (tile_m, grid_len) for the batch axis."""
    if B <= 128:
        # Latency path (DQN acting / small training batches): one full-batch
        # tile, no padding (block dims equal to full array dims are legal).
        return B, 1
    # Throughput path: big tiles to amortize the ~0.35 us per-step overhead,
    # but always >= 2 grid steps so both v7x TensorCores are used.
    tile_m = min(512, _ceil_to(pl.cdiv(B, 2), 128))
    return tile_m, pl.cdiv(B, tile_m)


@jax.jit
def network0_forward(x, prepared):
    """x: (B, input_size) float32.  Returns (B, output_size) float32."""
    B, in_size = x.shape
    out_size = prepared[6].shape[1]
    tile_m, grid_len = _batch_tiling(B)

    x_spec = pl.BlockSpec((tile_m, in_size), lambda i: (i, 0))
    # Constant index_map -> weights/biases are DMA'd once and stay resident.
    param_specs = [pl.BlockSpec(p.shape, lambda i: (0, 0)) for p in prepared]
    out_spec = pl.BlockSpec((tile_m, out_size), lambda i: (i, 0))

    return pl.pallas_call(
        mlp_kernel,
        out_shape=jax.ShapeDtypeStruct((B, out_size), jnp.float32),
        grid=(grid_len,),
        in_specs=[x_spec] + param_specs,
        out_specs=out_spec,
        compiler_params=pltpu.CompilerParams(
            dimension_semantics=("parallel",)),
    )(x, *prepared)


def init_params(key, input_size, output_size):
    """Deterministic parameters (PyTorch-Linear-style init, nontrivial BN
    running statistics to exercise the general eval-mode fold)."""
    dims = [(input_size, 128), (128, 256), (256, 512), (512, output_size)]
    params = []
    for i, (fan_in, fan_out) in enumerate(dims):
        key, kw, kb, kg, kbe, km, kv = jax.random.split(key, 7)
        bound = 1.0 / jnp.sqrt(fan_in)
        w = jax.random.uniform(kw, (fan_in, fan_out), jnp.float32, -bound, bound)
        b = jax.random.uniform(kb, (fan_out,), jnp.float32, -bound, bound)
        params += [w, b]
        if i < 3:  # BatchNorm1d params + running stats for hidden layers
            gamma = 1.0 + 0.1 * jax.random.normal(kg, (fan_out,), jnp.float32)
            beta = 0.1 * jax.random.normal(kbe, (fan_out,), jnp.float32)
            mean = 0.05 * jax.random.normal(km, (fan_out,), jnp.float32)
            var = jax.random.uniform(kv, (fan_out,), jnp.float32, 0.5, 1.5)
            params += [gamma, beta, mean, var]
    return tuple(params)


def reference_forward(x, params):
    """Pure-JAX f32 reference (eval-mode BN with running stats)."""
    (w1, b1, g1, be1, m1, v1,
     w2, b2, g2, be2, m2, v2,
     w3, b3, g3, be3, m3, v3,
     w4, b4) = params

    def layer(h, w, b, g, be, m, v):
        h = h @ w + b
        h = (h - m) / jnp.sqrt(v + BN_EPS) * g + be
        return jnp.maximum(h, 0.0)

    h = layer(x, w1, b1, g1, be1, m1, v1)
    h = layer(h, w2, b2, g2, be2, m2, v2)
    h = layer(h, w3, b3, g3, be3, m3, v3)
    return h @ w4 + b4


def reference_forward_prepared(x, prepared):
    """Reference using the same folded/cast weights the kernel sees."""
    w1, c1, w2, c2, w3, c3, w4, c4 = prepared
    wd = w1.dtype
    h = jnp.maximum(
        jnp.dot(x.astype(wd), w1, preferred_element_type=jnp.float32) + c1, 0.0)
    h = jnp.maximum(
        jnp.dot(h.astype(wd), w2, preferred_element_type=jnp.float32) + c2, 0.0)
    h = jnp.maximum(
        jnp.dot(h.astype(wd), w3, preferred_element_type=jnp.float32) + c3, 0.0)
    return jnp.dot(h, w4, preferred_element_type=jnp.float32) + c4


if __name__ == "__main__":
    INPUT_SIZE = 4    # CartPole observation dim
    OUTPUT_SIZE = 2   # CartPole action dim

    key = jax.random.PRNGKey(0)
    key, kx1, kx2 = jax.random.split(key, 3)

    params = init_params(key, INPUT_SIZE, OUTPUT_SIZE)
    prepared = prepare_params(params)  # one-time offline fold/cast

    # --- Small batch (latency path): single full-batch tile, no padding. ---
    x = jax.random.normal(kx1, (2, INPUT_SIZE), jnp.float32)
    out = jax.block_until_ready(network0_forward(x, prepared))
    assert out.shape == (2, OUTPUT_SIZE)

    # Tight check vs a reference using the identical folded weights.
    ref_q = reference_forward_prepared(x, prepared)
    assert jnp.allclose(out, ref_q, atol=1e-3, rtol=1e-3), (out, ref_q)
    # Looser check vs the full-precision f32 reference (bf16 hidden weights).
    ref = reference_forward(x, params)
    assert jnp.allclose(out, ref, atol=5e-2, rtol=5e-2), (out, ref)

    # --- Larger ragged batch: multi-tile parallel grid + masked tail. ---
    xb = jax.random.normal(kx2, (300, INPUT_SIZE), jnp.float32)
    outb = jax.block_until_ready(network0_forward(xb, prepared))
    assert outb.shape == (300, OUTPUT_SIZE)
    refb_q = reference_forward_prepared(xb, prepared)
    assert jnp.allclose(outb, refb_q, atol=1e-3, rtol=1e-3)

    print("KERNEL_OK")
</pallas_src>

<mosaic_0001>
module attributes {stable_mosaic.version = 11 : i64} {
  func.func @mlp_kernel(%arg0: i32, %arg1: memref<2x4xf32, #tpu.memory_space<vmem>>, %arg2: memref<4x128xbf16, #tpu.memory_space<vmem>>, %arg3: memref<1x128xf32, #tpu.memory_space<vmem>>, %arg4: memref<128x256xbf16, #tpu.memory_space<vmem>>, %arg5: memref<1x256xf32, #tpu.memory_space<vmem>>, %arg6: memref<256x512xbf16, #tpu.memory_space<vmem>>, %arg7: memref<1x512xf32, #tpu.memory_space<vmem>>, %arg8: memref<512x2xf32, #tpu.memory_space<vmem>>, %arg9: memref<1x2xf32, #tpu.memory_space<vmem>>, %arg10: memref<2x2xf32, #tpu.memory_space<vmem>>) attributes {dimension_semantics = [#tpu.dimension_semantics<parallel>], iteration_bounds = array<i64: 1>, scalar_prefetch = 0 : i64, scratch_operands = 0 : i64, tpu.core_type = #tpu.core_type<tc>, window_params = [{transform_indices = @transform_0, window_bounds = array<i64: 2, 4>}, {pipeline_mode = #tpu.pipeline_mode<synchronous>, transform_indices = @transform_1, window_bounds = array<i64: 4, 128>}, {pipeline_mode = #tpu.pipeline_mode<synchronous>, transform_indices = @transform_2, window_bounds = array<i64: 1, 128>}, {pipeline_mode = #tpu.pipeline_mode<synchronous>, transform_indices = @transform_3, window_bounds = array<i64: 128, 256>}, {pipeline_mode = #tpu.pipeline_mode<synchronous>, transform_indices = @transform_4, window_bounds = array<i64: 1, 256>}, {pipeline_mode = #tpu.pipeline_mode<synchronous>, transform_indices = @transform_5, window_bounds = array<i64: 256, 512>}, {pipeline_mode = #tpu.pipeline_mode<synchronous>, transform_indices = @transform_6, window_bounds = array<i64: 1, 512>}, {pipeline_mode = #tpu.pipeline_mode<synchronous>, transform_indices = @transform_7, window_bounds = array<i64: 512, 2>}, {pipeline_mode = #tpu.pipeline_mode<synchronous>, transform_indices = @transform_8, window_bounds = array<i64: 1, 2>}, {transform_indices = @transform_9, window_bounds = array<i64: 2, 2>}]} {
    %c0 = arith.constant 0 : index
    %c0_0 = arith.constant 0 : index
    %0 = vector.load %arg1[%c0, %c0_0] : memref<2x4xf32, #tpu.memory_space<vmem>>, vector<2x4xf32>
    %1 = arith.truncf %0 : vector<2x4xf32> to vector<2x4xbf16>
    %c0_1 = arith.constant 0 : index
    %c0_2 = arith.constant 0 : index
    %2 = vector.load %arg2[%c0_1, %c0_2] : memref<4x128xbf16, #tpu.memory_space<vmem>>, vector<4x128xbf16>
    %cst = arith.constant dense<0.000000e+00> : vector<2x128xf32>
    %3 = tpu.matmul %1, %2, %cst {dimension_numbers = #tpu.dot_dimension_numbers<[1], [0], [0], [1], [0, 0, 1, 1], [], []>} : vector<2x4xbf16>, vector<4x128xbf16>, vector<2x128xf32> -> vector<2x128xf32>
    %c0_3 = arith.constant 0 : index
    %c0_4 = arith.constant 0 : index
    %4 = vector.load %arg3[%c0_3, %c0_4] : memref<1x128xf32, #tpu.memory_space<vmem>>, vector<1x128xf32>
    %5 = vector.broadcast %4 : vector<1x128xf32> to vector<2x128xf32>
    %6 = arith.addf %3, %5 : vector<2x128xf32>
    %cst_5 = arith.constant 0.000000e+00 : f32
    %7 = vector.broadcast %cst_5 : f32 to vector<2x128xf32>
    %8 = arith.maximumf %6, %7 : vector<2x128xf32>
    %9 = arith.truncf %8 : vector<2x128xf32> to vector<2x128xbf16>
    %c0_6 = arith.constant 0 : index
    %c0_7 = arith.constant 0 : index
    %10 = vector.load %arg4[%c0_6, %c0_7] : memref<128x256xbf16, #tpu.memory_space<vmem>>, vector<128x256xbf16>
    %cst_8 = arith.constant dense<0.000000e+00> : vector<2x256xf32>
    %11 = tpu.matmul %9, %10, %cst_8 {dimension_numbers = #tpu.dot_dimension_numbers<[1], [0], [0], [1], [0, 0, 1, 1], [], []>} : vector<2x128xbf16>, vector<128x256xbf16>, vector<2x256xf32> -> vector<2x256xf32>
    %c0_9 = arith.constant 0 : index
    %c0_10 = arith.constant 0 : index
    %12 = vector.load %arg5[%c0_9, %c0_10] : memref<1x256xf32, #tpu.memory_space<vmem>>, vector<1x256xf32>
    %13 = vector.broadcast %12 : vector<1x256xf32> to vector<2x256xf32>
    %14 = arith.addf %11, %13 : vector<2x256xf32>
    %cst_11 = arith.constant 0.000000e+00 : f32
    %15 = vector.broadcast %cst_11 : f32 to vector<2x256xf32>
    %16 = arith.maximumf %14, %15 : vector<2x256xf32>
    %17 = arith.truncf %16 : vector<2x256xf32> to vector<2x256xbf16>
    %c0_12 = arith.constant 0 : index
    %c0_13 = arith.constant 0 : index
    %18 = vector.load %arg6[%c0_12, %c0_13] : memref<256x512xbf16, #tpu.memory_space<vmem>>, vector<256x512xbf16>
    %cst_14 = arith.constant dense<0.000000e+00> : vector<2x512xf32>
    %19 = tpu.matmul %17, %18, %cst_14 {dimension_numbers = #tpu.dot_dimension_numbers<[1], [0], [0], [1], [0, 0, 1, 1], [], []>} : vector<2x256xbf16>, vector<256x512xbf16>, vector<2x512xf32> -> vector<2x512xf32>
    %c0_15 = arith.constant 0 : index
    %c0_16 = arith.constant 0 : index
    %20 = vector.load %arg7[%c0_15, %c0_16] : memref<1x512xf32, #tpu.memory_space<vmem>>, vector<1x512xf32>
    %21 = vector.broadcast %20 : vector<1x512xf32> to vector<2x512xf32>
    %22 = arith.addf %19, %21 : vector<2x512xf32>
    %cst_17 = arith.constant 0.000000e+00 : f32
    %23 = vector.broadcast %cst_17 : f32 to vector<2x512xf32>
    %24 = arith.maximumf %22, %23 : vector<2x512xf32>
    %c0_18 = arith.constant 0 : index
    %c0_19 = arith.constant 0 : index
    %25 = vector.load %arg8[%c0_18, %c0_19] : memref<512x2xf32, #tpu.memory_space<vmem>>, vector<512x2xf32>
    %cst_20 = arith.constant dense<0.000000e+00> : vector<2x2xf32>
    %26 = tpu.matmul %24, %25, %cst_20 {dimension_numbers = #tpu.dot_dimension_numbers<[1], [0], [0], [1], [0, 0, 1, 1], [], []>} : vector<2x512xf32>, vector<512x2xf32>, vector<2x2xf32> -> vector<2x2xf32>
    %c0_21 = arith.constant 0 : index
    %c0_22 = arith.constant 0 : index
    %27 = vector.load %arg9[%c0_21, %c0_22] : memref<1x2xf32, #tpu.memory_space<vmem>>, vector<1x2xf32>
    %28 = vector.broadcast %27 : vector<1x2xf32> to vector<2x2xf32>
    %29 = arith.addf %26, %28 : vector<2x2xf32>
    %c0_23 = arith.constant 0 : index
    %c0_24 = arith.constant 0 : index
    %30 = vector.load %arg10[%c0_23, %c0_24] : memref<2x2xf32, #tpu.memory_space<vmem>>, vector<2x2xf32>
    tpu.vector_store %arg10[%c0_23, %c0_24], %29 {strides = array<i32>} : memref<2x2xf32, #tpu.memory_space<vmem>>, vector<2x2xf32>,
    return
  }
  func.func @transform_0(%arg0: i32) -> (i32, i32) {
    %c0_i32 = arith.constant 0 : i32
    %c0_i32_0 = arith.constant 0 : i32
    return %arg0, %c0_i32 : i32, i32
  }
  func.func @transform_1(%arg0: i32) -> (i32, i32) {
    %c0_i32 = arith.constant 0 : i32
    %c0_i32_0 = arith.constant 0 : i32
    %c0_i32_1 = arith.constant 0 : i32
    return %c0_i32, %c0_i32_0 : i32, i32
  }
  func.func @transform_2(%arg0: i32) -> (i32, i32) {
    %c0_i32 = arith.constant 0 : i32
    %c0_i32_0 = arith.constant 0 : i32
    %c0_i32_1 = arith.constant 0 : i32
    return %c0_i32, %c0_i32_0 : i32, i32
  }
  func.func @transform_3(%arg0: i32) -> (i32, i32) {
    %c0_i32 = arith.constant 0 : i32
    %c0_i32_0 = arith.constant 0 : i32
    %c0_i32_1 = arith.constant 0 : i32
    return %c0_i32, %c0_i32_0 : i32, i32
  }
  func.func @transform_4(%arg0: i32) -> (i32, i32) {
    %c0_i32 = arith.constant 0 : i32
    %c0_i32_0 = arith.constant 0 : i32
    %c0_i32_1 = arith.constant 0 : i32
    return %c0_i32, %c0_i32_0 : i32, i32
  }
  func.func @transform_5(%arg0: i32) -> (i32, i32) {
    %c0_i32 = arith.constant 0 : i32
    %c0_i32_0 = arith.constant 0 : i32
    %c0_i32_1 = arith.constant 0 : i32
    return %c0_i32, %c0_i32_0 : i32, i32
  }
  func.func @transform_6(%arg0: i32) -> (i32, i32) {
    %c0_i32 = arith.constant 0 : i32
    %c0_i32_0 = arith.constant 0 : i32
    %c0_i32_1 = arith.constant 0 : i32
    return %c0_i32, %c0_i32_0 : i32, i32
  }
  func.func @transform_7(%arg0: i32) -> (i32, i32) {
    %c0_i32 = arith.constant 0 : i32
    %c0_i32_0 = arith.constant 0 : i32
    %c0_i32_1 = arith.constant 0 : i32
    return %c0_i32, %c0_i32_0 : i32, i32
  }
  func.func @transform_8(%arg0: i32) -> (i32, i32) {
    %c0_i32 = arith.constant 0 : i32
    %c0_i32_0 = arith.constant 0 : i32
    %c0_i32_1 = arith.constant 0 : i32
    return %c0_i32, %c0_i32_0 : i32, i32
  }
  func.func @transform_9(%arg0: i32) -> (i32, i32) {
    %c0_i32 = arith.constant 0 : i32
    %c0_i32_0 = arith.constant 0 : i32
    return %arg0, %c0_i32 : i32, i32
  }
}

</mosaic_0001>

<llo_original>
// kernel: network0_forward.1
$region0: #{network0_forward.1}
  #allocation0 [shape = 'u32[]', space=smem, size = 0x4, offset = 0x4, fixed_abs, tag = 'smem constant byte address 0x4 - core index']
  #allocation1 [shape = 'u32[144,128]{1,0:T(1,128)}', space=vmem, size = 0x12000, scoped, tag = 'internal scratch']
  %s0 = inlined_call_operand.vmem [shape: f32[2,4], index: 0, kind: input, shape index: {}]
  %s1 = inlined_call_operand.vmem [shape: bf16[4,128], index: 1, kind: input, shape index: {}]
  %s2 = inlined_call_operand.vmem [shape: f32[1,128], index: 2, kind: input, shape index: {}]
  %s3 = inlined_call_operand.hbm [shape: bf16[128,256], index: 3, kind: input, shape index: {}]
  %s4 = inlined_call_operand.vmem [shape: f32[1,256], index: 4, kind: input, shape index: {}]
  %s5 = inlined_call_operand.vmem [shape: bf16[256,512], index: 5, kind: input, shape index: {}]
  %s6 = inlined_call_operand.vmem [shape: f32[1,512], index: 6, kind: input, shape index: {}]
  %s7 = inlined_call_operand.vmem [shape: f32[512,2], index: 7, kind: input, shape index: {}]
  %s8 = inlined_call_operand.vmem [shape: f32[1,2], index: 8, kind: input, shape index: {}]
  %s9 = inlined_call_operand.hbm [shape: f32[2,2], index: 9, kind: output, shape index: {}]
  %s10 = sld [smem:[#allocation0]]
  $region50: #{network0_forward.1} parent=0
    _
  %s12 = ssub.s32 1, %s10
  %s13 = scalar_select 0, %s12, %s10
  $region1: #{network0_forward.1} parent=0
    #allocation2 [shape = 'u8[65536]{0}', space=vmem, size = 0x10000, scoped, tag = 'input window, operand 3, single buffered']
    #allocation3 [shape = 's32[1]{0}', space=sflag, size = 0x4, scoped, tag = 'scoped memory for network0_forward.1']
    #allocation4 [shape = 's32[1]{0}', space=sflag, size = 0x4, scoped, tag = 'scoped memory for network0_forward.1']
    #allocation5 [shape = 'u8[1024]{0}', space=vmem, size = 0x400, scoped, tag = 'output window, operand 0, single buffered']
    %14 = vsyncpa [#allocation3], 0
    %15 = vsyncpa [#allocation4], 0
    // Predicated region
    $region2: #{network0_forward.1} parent=1 // pred_check
      _
    $region3: #{network0_forward.1} parent=1 // pred_check_branch
      %17 = sbr.rel (0) target = $region5
    $region4: #{network0_forward.1} parent=1 // pred_region
      _
    $region5: #{network0_forward.1} parent=1 // pred_fallthru
      _
    // Predicated region
    $region6: #{network0_forward.1} parent=1 // pred_check
      _
    $region7: #{network0_forward.1} parent=1 // pred_check_branch
      %19 = sbr.rel (0) target = $region9
    $region8: #{network0_forward.1} parent=1 // pred_region
      _
    $region9: #{network0_forward.1} parent=1 // pred_fallthru
      _
    // Predicated region
    $region10: #{network0_forward.1} parent=1 // pred_check
      _
    $region11: #{network0_forward.1} parent=1 // pred_check_branch
      %21 = sbr.rel (0) target = $region13
    $region12: #{network0_forward.1} parent=1 // pred_region
      _
    $region13: #{network0_forward.1} parent=1 // pred_fallthru
      _
    // Predicated region
    $region14: #{network0_forward.1} parent=1 // pred_check
      _
    $region15: #{network0_forward.1} parent=1 // pred_check_branch
      %23 = sbr.rel (0) target = $region17
    $region16: #{network0_forward.1} parent=1 // pred_region
      %s25 = ssub.s32 2048, 2048
      %26 = vsyncadd [#allocation3], %s25
      %s27 = sshll.u32 [#allocation2], 4
      %s28 = int_to_ptr.vmem [resolvable:$true] %s27
      %33 = dma.hbm_to_vmem [thread:$0]  %s3, 2048, %s28, [#allocation3], 128, 128, 8
    $region17: #{network0_forward.1} parent=1 // pred_fallthru
      _
    // Predicated region
    $region18: #{network0_forward.1} parent=1 // pred_check
      _
    $region19: #{network0_forward.1} parent=1 // pred_check_branch
      %35 = sbr.rel (0) target = $region21
    $region20: #{network0_forward.1} parent=1 // pred_region
      _
    $region21: #{network0_forward.1} parent=1 // pred_fallthru
      _
    // Predicated region
    $region22: #{network0_forward.1} parent=1 // pred_check
      _
    $region23: #{network0_forward.1} parent=1 // pred_check_branch
      %37 = sbr.rel (0) target = $region25
    $region24: #{network0_forward.1} parent=1 // pred_region
      _
    $region25: #{network0_forward.1} parent=1 // pred_fallthru
      _
    // Predicated region
    $region26: #{network0_forward.1} parent=1 // pred_check
      _
    $region27: #{network0_forward.1} parent=1 // pred_check_branch
      %39 = sbr.rel (0) target = $region29
    $region28: #{network0_forward.1} parent=1 // pred_region
      _
    $region29: #{network0_forward.1} parent=1 // pred_fallthru
      _
    // Predicated region
    $region30: #{network0_forward.1} parent=1 // pred_check
      _
    $region31: #{network0_forward.1} parent=1 // pred_check_branch
      %41 = sbr.rel (0) target = $region33
    $region32: #{network0_forward.1} parent=1 // pred_region
      _
    $region33: #{network0_forward.1} parent=1 // pred_fallthru
      _
    // Predicated region
    $region34: #{network0_forward.1} parent=1 // pred_check
      _
    $region35: #{network0_forward.1} parent=1 // pred_check_branch
      %43 = sbr.rel (0) target = $region37
    $region36: #{network0_forward.1} parent=1 // pred_region
      _
    $region37: #{network0_forward.1} parent=1 // pred_fallthru
      _
    // Predicated region
    $region38: #{network0_forward.1} parent=1 // pred_check
      _
    $region39: #{network0_forward.1} parent=1 // pred_check_branch
      %45 = sbr.rel (0) target = $region41
    $region40: #{network0_forward.1} parent=1 // pred_region
      %46 = dma.done [#allocation3], 2048
    $region41: #{network0_forward.1} parent=1 // pred_fallthru
      _
    %v48 = vld [vmem:[%s0] sm:$0x3]
    %v49 = vpack.c.bf16 %v48, %v48
    %v50 = vld [vmem:[%s1] sm:$0x3]
    %v51 = vld [vmem:[%s2] sm:$0x1]
    %v53 = vlaneseq
    %v54 = vshrl.u32 %v53, 7
    %v55 = vsub.s32 0, %v54
    %v56 = vrot.slane %v51, %v55
    %vm58 = vcmask 31744
    %v60 = vsel %vm58, %v49, 0
    %vm62 = vcmask 1041408
    %v64 = vsel %vm62, %v50, 0
    %66 = vmatprep.subr.bf16.mxu0 0
    %67 = vmatpush1.bf16.msra.mxu0 %v64
    %68 = vmatprep.subr.bf16.mxu0 0
    %69 = vmatpush1.bf16.msra.mxu0 0
    %70 = vmatprep.subr.bf16.mxu0 0
    %71 = vmatpush1.bf16.msra.mxu0 0
    %72 = vmatprep.subr.bf16.mxu0 0
    %73 = vmatpush1.bf16.msra.mxu0 0
    %74 = vmatprep.subr.bf16.mxu0 0
    %75 = vmatpush1.bf16.msra.mxu0 0
    %76 = vmatprep.subr.bf16.mxu0 0
    %77 = vmatpush1.bf16.msra.mxu0 0
    %78 = vmatprep.subr.bf16.mxu0 0
    %79 = vmatpush1.bf16.msra.mxu0 0
    %80 = vmatprep.subr.bf16.mxu0 0
    %81 = vmatpush1.bf16.msra.mxu0 0
    %82 = vmatprep.subr.bf16.mxu0 0
    %83 = vmatpush1.bf16.msra.mxu0 0
    %84 = vmatprep.subr.bf16.mxu0 0
    %85 = vmatpush1.bf16.msra.mxu0 0
    %86 = vmatprep.subr.bf16.mxu0 0
    %87 = vmatpush1.bf16.msra.mxu0 0
    %88 = vmatprep.subr.bf16.mxu0 0
    %89 = vmatpush1.bf16.msra.mxu0 0
    %90 = vmatprep.subr.bf16.mxu0 0
    %91 = vmatpush1.bf16.msra.mxu0 0
    %92 = vmatprep.subr.bf16.mxu0 0
    %93 = vmatpush1.bf16.msra.mxu0 0
    %94 = vmatprep.subr.bf16.mxu0 0
    %95 = vmatpush1.bf16.msra.mxu0 0
    %96 = vmatprep.subr.bf16.mxu0 0
    %97 = vmatpush1.bf16.msra.mxu0 0
    %98 = vmatprep.mubr.bf16.mxu0 0
    %99 = vmatmul.mubr.bf16.gmra.mrb[0].mxu0 %v60
    %v100 = vpop.f32.mrb[0].mxu0
    %v101 = vadd.f32 %v56, %v100
    %v102 = vpop.f32.mrb[0].mxu0
    %v103 = vpop.f32.mrb[0].mxu0
    %v104 = vpop.f32.mrb[0].mxu0
    %105 = vdwg.mxu0
    %v106 = vmax.f32 %v101, 0.0
    %v107 = vpack.c.bf16 %v106, %v106
    %v108 = vld [vmem:[#allocation2] sm:$0xff]
    %v109 = vld [vmem:[#allocation2 + $0x8] sm:$0xff]
    %v110 = vld [vmem:[#allocation2 + $0x10] sm:$0xff]
    %v111 = vld [vmem:[#allocation2 + $0x18] sm:$0xff]
    %v112 = vld [vmem:[#allocation2 + $0x20] sm:$0xff]
    %v113 = vld [vmem:[#allocation2 + $0x28] sm:$0xff]
    %v114 = vld [vmem:[#allocation2 + $0x30] sm:$0xff]
    %v115 = vld [vmem:[#allocation2 + $0x38] sm:$0xff]
    %v116 = vld [vmem:[#allocation2 + $0x40] sm:$0xff]
    %v117 = vld [vmem:[#allocation2 + $0x48] sm:$0xff]
    %v118 = vld [vmem:[#allocation2 + $0x50] sm:$0xff]
    %v119 = vld [vmem:[#allocation2 + $0x58] sm:$0xff]
    %v120 = vld [vmem:[#allocation2 + $0x60] sm:$0xff]
    %v121 = vld [vmem:[#allocation2 + $0x68] sm:$0xff]
    %v122 = vld [vmem:[#allocation2 + $0x70] sm:$0xff]
    %v123 = vld [vmem:[#allocation2 + $0x78] sm:$0xff]
    %v124 = vld [vmem:[%s4] sm:$0x3]
    %v126 = vlaneseq
    %v127 = vshrl.u32 %v126, 7
    %v128 = vsub.s32 0, %v127
    %v129 = vrot.slane %v124, %v128
    %v130 = vlaneseq
    %v131 = vshrl.u32 %v130, 7
    %v132 = vsub.s32 1, %v131
    %v133 = vrot.slane %v124, %v132
    %v152 = vunpack.c.l.b16 %v108
    %v153 = vunpack.c.h.b16 %v108
    %v154 = vunpack.c.l.b16 %v109
    %v155 = vunpack.c.h.b16 %v109
    %v156 = vunpack.c.l.b16 %v110
    %v157 = vunpack.c.h.b16 %v110
    %v158 = vunpack.c.l.b16 %v111
    %v159 = vunpack.c.h.b16 %v111
    %v160 = vunpack.c.l.b16 %v112
    %v161 = vunpack.c.h.b16 %v112
    %v162 = vunpack.c.l.b16 %v113
    %v163 = vunpack.c.h.b16 %v113
    %v164 = vunpack.c.l.b16 %v114
    %v165 = vunpack.c.h.b16 %v114
    %v166 = vunpack.c.l.b16 %v115
    %v167 = vunpack.c.h.b16 %v115
    %v168 = vunpack.c.l.b16 %v116
    %v169 = vunpack.c.h.b16 %v116
    %v170 = vunpack.c.l.b16 %v117
    %v171 = vunpack.c.h.b16 %v117
    %v172 = vunpack.c.l.b16 %v118
    %v173 = vunpack.c.h.b16 %v118
    %v174 = vunpack.c.l.b16 %v119
    %v175 = vunpack.c.h.b16 %v119
    %v176 = vunpack.c.l.b16 %v120
    %v177 = vunpack.c.h.b16 %v120
    %v178 = vunpack.c.l.b16 %v121
    %v179 = vunpack.c.h.b16 %v121
    %v180 = vunpack.c.l.b16 %v122
    %v181 = vunpack.c.h.b16 %v122
    %v182 = vunpack.c.l.b16 %v123
    %v183 = vunpack.c.h.b16 %v123
    %v184 = vpack.c.b16 %v154, %v152
    %v185 = vpack.c.b16 %v155, %v153
    %v186 = vpack.c.b16 %v158, %v156
    %v187 = vpack.c.b16 %v159, %v157
    %v188 = vpack.c.b16 %v162, %v160
    %v189 = vpack.c.b16 %v163, %v161
    %v190 = vpack.c.b16 %v166, %v164
    %v191 = vpack.c.b16 %v167, %v165
    %v192 = vpack.c.b16 %v170, %v168
    %v193 = vpack.c.b16 %v171, %v169
    %v194 = vpack.c.b16 %v174, %v172
    %v195 = vpack.c.b16 %v175, %v173
    %v196 = vpack.c.b16 %v178, %v176
    %v197 = vpack.c.b16 %v179, %v177
    %v198 = vpack.c.b16 %v182, %v180
    %v199 = vpack.c.b16 %v183, %v181
    %216 = vmatprep.subr.bf16.mxu0 %v185
    %217 = vmatpush1.bf16.msra.mxu0 %v184
    %218 = vmatprep.subr.bf16.mxu0 %v187
    %219 = vmatpush1.bf16.msra.mxu0 %v186
    %220 = vmatprep.subr.bf16.mxu0 %v189
    %221 = vmatpush1.bf16.msra.mxu0 %v188
    %222 = vmatprep.subr.bf16.mxu0 %v191
    %223 = vmatpush1.bf16.msra.mxu0 %v190
    %224 = vmatprep.subr.bf16.mxu0 %v193
    %225 = vmatpush1.bf16.msra.mxu0 %v192
    %226 = vmatprep.subr.bf16.mxu0 %v195
    %227 = vmatpush1.bf16.msra.mxu0 %v194
    %228 = vmatprep.subr.bf16.mxu0 %v197
    %229 = vmatpush1.bf16.msra.mxu0 %v196
    %230 = vmatprep.subr.bf16.mxu0 %v199
    %231 = vmatpush1.bf16.msra.mxu0 %v198
    %232 = vmatprep.subr.bf16.mxu0 0
    %233 = vmatpush1.bf16.msra.mxu0 0
    %234 = vmatprep.subr.bf16.mxu0 0
    %235 = vmatpush1.bf16.msra.mxu0 0
    %236 = vmatprep.subr.bf16.mxu0 0
    %237 = vmatpush1.bf16.msra.mxu0 0
    %238 = vmatprep.subr.bf16.mxu0 0
    %239 = vmatpush1.bf16.msra.mxu0 0
    %240 = vmatprep.subr.bf16.mxu0 0
    %241 = vmatpush1.bf16.msra.mxu0 0
    %242 = vmatprep.subr.bf16.mxu0 0
    %243 = vmatpush1.bf16.msra.mxu0 0
    %244 = vmatprep.subr.bf16.mxu0 0
    %245 = vmatpush1.bf16.msra.mxu0 0
    %246 = vmatprep.subr.bf16.mxu0 0
    %247 = vmatpush1.bf16.msra.mxu0 0
    %248 = vmatprep.mubr.bf16.mxu0 0
    %249 = vmatmul.mubr.bf16.gmra.mrb[0].mxu0 %v107
    %v250 = vpop.f32.mrb[0].mxu0
    %v251 = vadd.f32 %v129, %v250
    %v252 = vpop.f32.mrb[0].mxu0
    %v253 = vadd.f32 %v133, %v252
    %v254 = vpop.f32.mrb[0].mxu0
    %v255 = vpop.f32.mrb[0].mxu0
    %256 = vdwg.mxu0
    %v257 = vmax.f32 %v251, 0.0
    %v258 = vmax.f32 %v253, 0.0
    %v259 = vpack.c.bf16 %v257, %v257
    %v260 = vpack.c.bf16 %v258, %v258
    %v261 = vld [vmem:[%s5] sm:$0xff]
    %v262 = vld [vmem:[%s5 + $0x8] sm:$0xff]
    %v263 = vld [vmem:[%s5 + $0x10] sm:$0xff]
    %v264 = vld [vmem:[%s5 + $0x18] sm:$0xff]
    %v265 = vld [vmem:[%s5 + $0x20] sm:$0xff]
    %v266 = vld [vmem:[%s5 + $0x28] sm:$0xff]
    %v267 = vld [vmem:[%s5 + $0x30] sm:$0xff]
    %v268 = vld [vmem:[%s5 + $0x38] sm:$0xff]
    %v269 = vld [vmem:[%s5 + $0x40] sm:$0xff]
    %v270 = vld [vmem:[%s5 + $0x48] sm:$0xff]
    %v271 = vld [vmem:[%s5 + $0x50] sm:$0xff]
    %v272 = vld [vmem:[%s5 + $0x58] sm:$0xff]
    %v273 = vld [vmem:[%s5 + $0x60] sm:$0xff]
    %v274 = vld [vmem:[%s5 + $0x68] sm:$0xff]
    %v275 = vld [vmem:[%s5 + $0x70] sm:$0xff]
    %v276 = vld [vmem:[%s5 + $0x78] sm:$0xff]
    %v277 = vld [vmem:[%s5 + $0x80] sm:$0xff]
    %v278 = vld [vmem:[%s5 + $0x88] sm:$0xff]
    %v279 = vld [vmem:[%s5 + $0x90] sm:$0xff]
    %v280 = vld [vmem:[%s5 + $0x98] sm:$0xff]
    %v281 = vld [vmem:[%s5 + $0xa0] sm:$0xff]
    %v282 = vld [vmem:[%s5 + $0xa8] sm:$0xff]
    %v283 = vld [vmem:[%s5 + $0xb0] sm:$0xff]
    %v284 = vld [vmem:[%s5 + $0xb8] sm:$0xff]
    %v285 = vld [vmem:[%s5 + $0xc0] sm:$0xff]
    %v286 = vld [vmem:[%s5 + $0xc8] sm:$0xff]
    %v287 = vld [vmem:[%s5 + $0xd0] sm:$0xff]
    %v288 = vld [vmem:[%s5 + $0xd8] sm:$0xff]
    %v289 = vld [vmem:[%s5 + $0xe0] sm:$0xff]
    %v290 = vld [vmem:[%s5 + $0xe8] sm:$0xff]
    %v291 = vld [vmem:[%s5 + $0xf0] sm:$0xff]
    %v292 = vld [vmem:[%s5 + $0xf8] sm:$0xff]
    %v293 = vld [vmem:[%s5 + $0x100] sm:$0xff]
    %v294 = vld [vmem:[%s5 + $0x108] sm:$0xff]
    %v295 = vld [vmem:[%s5 + $0x110] sm:$0xff]
    %v296 = vld [vmem:[%s5 + $0x118] sm:$0xff]
    %v297 = vld [vmem:[%s5 + $0x120] sm:$0xff]
    %v298 = vld [vmem:[%s5 + $0x128] sm:$0xff]
    %v299 = vld [vmem:[%s5 + $0x130] sm:$0xff]
    %v300 = vld [vmem:[%s5 + $0x138] sm:$0xff]
    %v301 = vld [vmem:[%s5 + $0x140] sm:$0xff]
    %v302 = vld [vmem:[%s5 + $0x148] sm:$0xff]
    %v303 = vld [vmem:[%s5 + $0x150] sm:$0xff]
    %v304 = vld [vmem:[%s5 + $0x158] sm:$0xff]
    %v305 = vld [vmem:[%s5 + $0x160] sm:$0xff]
    %v306 = vld [vmem:[%s5 + $0x168] sm:$0xff]
    %v307 = vld [vmem:[%s5 + $0x170] sm:$0xff]
    %v308 = vld [vmem:[%s5 + $0x178] sm:$0xff]
    %v309 = vld [vmem:[%s5 + $0x180] sm:$0xff]
    %v310 = vld [vmem:[%s5 + $0x188] sm:$0xff]
    %v311 = vld [vmem:[%s5 + $0x190] sm:$0xff]
    %v312 = vld [vmem:[%s5 + $0x198] sm:$0xff]
    %v313 = vld [vmem:[%s5 + $0x1a0] sm:$0xff]
    %v314 = vld [vmem:[%s5 + $0x1a8] sm:$0xff]
    %v315 = vld [vmem:[%s5 + $0x1b0] sm:$0xff]
    %v316 = vld [vmem:[%s5 + $0x1b8] sm:$0xff]
    %v317 = vld [vmem:[%s5 + $0x1c0] sm:$0xff]
    %v318 = vld [vmem:[%s5 + $0x1c8] sm:$0xff]
    %v319 = vld [vmem:[%s5 + $0x1d0] sm:$0xff]
    %v320 = vld [vmem:[%s5 + $0x1d8] sm:$0xff]
    %v321 = vld [vmem:[%s5 + $0x1e0] sm:$0xff]
    %v322 = vld [vmem:[%s5 + $0x1e8] sm:$0xff]
    %v323 = vld [vmem:[%s5 + $0x1f0] sm:$0xff]
    %v324 = vld [vmem:[%s5 + $0x1f8] sm:$0xff]
    %v325 = vld [vmem:[%s6] sm:$0xf]
    %v327 = vlaneseq
    %v328 = vshrl.u32 %v327, 7
    %v329 = vsub.s32 0, %v328
    %v330 = vrot.slane %v325, %v329
    %v331 = vlaneseq
    %v332 = vshrl.u32 %v331, 7
    %v333 = vsub.s32 1, %v332
    %v334 = vrot.slane %v325, %v333
    %v335 = vlaneseq
    %v336 = vshrl.u32 %v335, 7
    %v337 = vsub.s32 2, %v336
    %v338 = vrot.slane %v325, %v337
    %v339 = vlaneseq
    %v340 = vshrl.u32 %v339, 7
    %v341 = vsub.s32 3, %v340
    %v342 = vrot.slane %v325, %v341
    %v411 = vunpack.c.l.b16 %v261
    %v412 = vunpack.c.h.b16 %v261
    %v413 = vunpack.c.l.b16 %v262
    %v414 = vunpack.c.h.b16 %v262
    %v415 = vunpack.c.l.b16 %v263
    %v416 = vunpack.c.h.b16 %v263
    %v417 = vunpack.c.l.b16 %v264
    %v418 = vunpack.c.h.b16 %v264
    %v419 = vunpack.c.l.b16 %v265
    %v420 = vunpack.c.h.b16 %v265
    %v421 = vunpack.c.l.b16 %v266
    %v422 = vunpack.c.h.b16 %v266
    %v423 = vunpack.c.l.b16 %v267
    %v424 = vunpack.c.h.b16 %v267
    %v425 = vunpack.c.l.b16 %v268
    %v426 = vunpack.c.h.b16 %v268
    %v427 = vunpack.c.l.b16 %v269
    %v428 = vunpack.c.h.b16 %v269
    %v429 = vunpack.c.l.b16 %v270
    %v430 = vunpack.c.h.b16 %v270
    %v431 = vunpack.c.l.b16 %v271
    %v432 = vunpack.c.h.b16 %v271
    %v433 = vunpack.c.l.b16 %v272
    %v434 = vunpack.c.h.b16 %v272
    %v435 = vunpack.c.l.b16 %v273
    %v436 = vunpack.c.h.b16 %v273
    %v437 = vunpack.c.l.b16 %v274
    %v438 = vunpack.c.h.b16 %v274
    %v439 = vunpack.c.l.b16 %v275
    %v440 = vunpack.c.h.b16 %v275
    %v441 = vunpack.c.l.b16 %v276
    %v442 = vunpack.c.h.b16 %v276
    %v443 = vunpack.c.l.b16 %v277
    %v444 = vunpack.c.h.b16 %v277
    %v445 = vunpack.c.l.b16 %v278
    %v446 = vunpack.c.h.b16 %v278
    %v447 = vunpack.c.l.b16 %v279
    %v448 = vunpack.c.h.b16 %v279
    %v449 = vunpack.c.l.b16 %v280
    %v450 = vunpack.c.h.b16 %v280
    %v451 = vunpack.c.l.b16 %v281
    %v452 = vunpack.c.h.b16 %v281
    %v453 = vunpack.c.l.b16 %v282
    %v454 = vunpack.c.h.b16 %v282
    %v455 = vunpack.c.l.b16 %v283
    %v456 = vunpack.c.h.b16 %v283
    %v457 = vunpack.c.l.b16 %v284
    %v458 = vunpack.c.h.b16 %v284
    %v459 = vunpack.c.l.b16 %v285
    %v460 = vunpack.c.h.b16 %v285
    %v461 = vunpack.c.l.b16 %v286
    %v462 = vunpack.c.h.b16 %v286
    %v463 = vunpack.c.l.b16 %v287
    %v464 = vunpack.c.h.b16 %v287
    %v465 = vunpack.c.l.b16 %v288
    %v466 = vunpack.c.h.b16 %v288
    %v467 = vunpack.c.l.b16 %v289
    %v468 = vunpack.c.h.b16 %v289
    %v469 = vunpack.c.l.b16 %v290
    %v470 = vunpack.c.h.b16 %v290
    %v471 = vunpack.c.l.b16 %v291
    %v472 = vunpack.c.h.b16 %v291
    %v473 = vunpack.c.l.b16 %v292
    %v474 = vunpack.c.h.b16 %v292
    %v475 = vunpack.c.l.b16 %v293
    %v476 = vunpack.c.h.b16 %v293
    %v477 = vunpack.c.l.b16 %v294
    %v478 = vunpack.c.h.b16 %v294
    %v479 = vunpack.c.l.b16 %v295
    %v480 = vunpack.c.h.b16 %v295
    %v481 = vunpack.c.l.b16 %v296
    %v482 = vunpack.c.h.b16 %v296
    %v483 = vunpack.c.l.b16 %v297
    %v484 = vunpack.c.h.b16 %v297
    %v485 = vunpack.c.l.b16 %v298
    %v486 = vunpack.c.h.b16 %v298
    %v487 = vunpack.c.l.b16 %v299
    %v488 = vunpack.c.h.b16 %v299
    %v489 = vunpack.c.l.b16 %v300
    %v490 = vunpack.c.h.b16 %v300
    %v491 = vunpack.c.l.b16 %v301
    %v492 = vunpack.c.h.b16 %v301
    %v493 = vunpack.c.l.b16 %v302
    %v494 = vunpack.c.h.b16 %v302
    %v495 = vunpack.c.l.b16 %v303
    %v496 = vunpack.c.h.b16 %v303
    %v497 = vunpack.c.l.b16 %v304
    %v498 = vunpack.c.h.b16 %v304
    %v499 = vunpack.c.l.b16 %v305
    %v500 = vunpack.c.h.b16 %v305
    %v501 = vunpack.c.l.b16 %v306
    %v502 = vunpack.c.h.b16 %v306
    %v503 = vunpack.c.l.b16 %v307
    %v504 = vunpack.c.h.b16 %v307
    %v505 = vunpack.c.l.b16 %v308
    %v506 = vunpack.c.h.b16 %v308
    %v507 = vunpack.c.l.b16 %v309
    %v508 = vunpack.c.h.b16 %v309
    %v509 = vunpack.c.l.b16 %v310
    %v510 = vunpack.c.h.b16 %v310
    %v511 = vunpack.c.l.b16 %v311
    %v512 = vunpack.c.h.b16 %v311
    %v513 = vunpack.c.l.b16 %v312
    %v514 = vunpack.c.h.b16 %v312
    %v515 = vunpack.c.l.b16 %v313
    %v516 = vunpack.c.h.b16 %v313
    %v517 = vunpack.c.l.b16 %v314
    %v518 = vunpack.c.h.b16 %v314
    %v519 = vunpack.c.l.b16 %v315
    %v520 = vunpack.c.h.b16 %v315
    %v521 = vunpack.c.l.b16 %v316
    %v522 = vunpack.c.h.b16 %v316
    %v523 = vunpack.c.l.b16 %v317
    %v524 = vunpack.c.h.b16 %v317
    %v525 = vunpack.c.l.b16 %v318
    %v526 = vunpack.c.h.b16 %v318
    %v527 = vunpack.c.l.b16 %v319
    %v528 = vunpack.c.h.b16 %v319
    %v529 = vunpack.c.l.b16 %v320
    %v530 = vunpack.c.h.b16 %v320
    %v531 = vunpack.c.l.b16 %v321
    %v532 = vunpack.c.h.b16 %v321
    %v533 = vunpack.c.l.b16 %v322
    %v534 = vunpack.c.h.b16 %v322
    %v535 = vunpack.c.l.b16 %v323
    %v536 = vunpack.c.h.b16 %v323
    %v537 = vunpack.c.l.b16 %v324
    %v538 = vunpack.c.h.b16 %v324
    %v539 = vpack.c.b16 %v415, %v411
    %v540 = vpack.c.b16 %v416, %v412
    %v541 = vpack.c.b16 %v417, %v413
    %v542 = vpack.c.b16 %v418, %v414
    %v543 = vpack.c.b16 %v423, %v419
    %v544 = vpack.c.b16 %v424, %v420
    %v545 = vpack.c.b16 %v425, %v421
    %v546 = vpack.c.b16 %v426, %v422
    %v547 = vpack.c.b16 %v431, %v427
    %v548 = vpack.c.b16 %v432, %v428
    %v549 = vpack.c.b16 %v433, %v429
    %v550 = vpack.c.b16 %v434, %v430
    %v551 = vpack.c.b16 %v439, %v435
    %v552 = vpack.c.b16 %v440, %v436
    %v553 = vpack.c.b16 %v441, %v437
    %v554 = vpack.c.b16 %v442, %v438
    %v555 = vpack.c.b16 %v447, %v443
    %v556 = vpack.c.b16 %v448, %v444
    %v557 = vpack.c.b16 %v449, %v445
    %v558 = vpack.c.b16 %v450, %v446
    %v559 = vpack.c.b16 %v455, %v451
    %v560 = vpack.c.b16 %v456, %v452
    %v561 = vpack.c.b16 %v457, %v453
    %v562 = vpack.c.b16 %v458, %v454
    %v563 = vpack.c.b16 %v463, %v459
    %v564 = vpack.c.b16 %v464, %v460
    %v565 = vpack.c.b16 %v465, %v461
    %v566 = vpack.c.b16 %v466, %v462
    %v567 = vpack.c.b16 %v471, %v467
    %v568 = vpack.c.b16 %v472, %v468
    %v569 = vpack.c.b16 %v473, %v469
    %v570 = vpack.c.b16 %v474, %v470
    %v571 = vpack.c.b16 %v479, %v475
    %v572 = vpack.c.b16 %v480, %v476
    %v573 = vpack.c.b16 %v481, %v477
    %v574 = vpack.c.b16 %v482, %v478
    %v575 = vpack.c.b16 %v487, %v483
    %v576 = vpack.c.b16 %v488, %v484
    %v577 = vpack.c.b16 %v489, %v485
    %v578 = vpack.c.b16 %v490, %v486
    %v579 = vpack.c.b16 %v495, %v491
    %v580 = vpack.c.b16 %v496, %v492
    %v581 = vpack.c.b16 %v497, %v493
    %v582 = vpack.c.b16 %v498, %v494
    %v583 = vpack.c.b16 %v503, %v499
    %v584 = vpack.c.b16 %v504, %v500
    %v585 = vpack.c.b16 %v505, %v501
    %v586 = vpack.c.b16 %v506, %v502
    %v587 = vpack.c.b16 %v511, %v507
    %v588 = vpack.c.b16 %v512, %v508
    %v589 = vpack.c.b16 %v513, %v509
    %v590 = vpack.c.b16 %v514, %v510
    %v591 = vpack.c.b16 %v519, %v515
    %v592 = vpack.c.b16 %v520, %v516
    %v593 = vpack.c.b16 %v521, %v517
    %v594 = vpack.c.b16 %v522, %v518
    %v595 = vpack.c.b16 %v527, %v523
    %v596 = vpack.c.b16 %v528, %v524
    %v597 = vpack.c.b16 %v529, %v525
    %v598 = vpack.c.b16 %v530, %v526
    %v599 = vpack.c.b16 %v535, %v531
    %v600 = vpack.c.b16 %v536, %v532
    %v601 = vpack.c.b16 %v537, %v533
    %v602 = vpack.c.b16 %v538, %v534
    %667 = vmatprep.subr.bf16.mxu0 %v540
    %668 = vmatpush1.bf16.msra.mxu0 %v539
    %669 = vmatprep.subr.bf16.mxu0 %v544
    %670 = vmatpush1.bf16.msra.mxu0 %v543
    %671 = vmatprep.subr.bf16.mxu0 %v548
    %672 = vmatpush1.bf16.msra.mxu0 %v547
    %673 = vmatprep.subr.bf16.mxu0 %v552
    %674 = vmatpush1.bf16.msra.mxu0 %v551
    %675 = vmatprep.subr.bf16.mxu0 %v556
    %676 = vmatpush1.bf16.msra.mxu0 %v555
    %677 = vmatprep.subr.bf16.mxu0 %v560
    %678 = vmatpush1.bf16.msra.mxu0 %v559
    %679 = vmatprep.subr.bf16.mxu0 %v564
    %680 = vmatpush1.bf16.msra.mxu0 %v563
    %681 = vmatprep.subr.bf16.mxu0 %v568
    %682 = vmatpush1.bf16.msra.mxu0 %v567
    %683 = vmatprep.subr.bf16.mxu0 %v572
    %684 = vmatpush1.bf16.msra.mxu0 %v571
    %685 = vmatprep.subr.bf16.mxu0 %v576
    %686 = vmatpush1.bf16.msra.mxu0 %v575
    %687 = vmatprep.subr.bf16.mxu0 %v580
    %688 = vmatpush1.bf16.msra.mxu0 %v579
    %689 = vmatprep.subr.bf16.mxu0 %v584
    %690 = vmatpush1.bf16.msra.mxu0 %v583
    %691 = vmatprep.subr.bf16.mxu0 %v588
    %692 = vmatpush1.bf16.msra.mxu0 %v587
    %693 = vmatprep.subr.bf16.mxu0 %v592
    %694 = vmatpush1.bf16.msra.mxu0 %v591
    %695 = vmatprep.subr.bf16.mxu0 %v596
    %696 = vmatpush1.bf16.msra.mxu0 %v595
    %697 = vmatprep.subr.bf16.mxu0 %v600
    %698 = vmatpush1.bf16.msra.mxu0 %v599
    %699 = vmatprep.mubr.bf16.mxu0 %v260
    %700 = vmatmul.mubr.bf16.gmra.mrb[0].mxu0 %v259
    %v701 = vpop.f32.mrb[0].mxu0
    %v702 = vadd.f32 %v330, %v701
    %v703 = vpop.f32.mrb[0].mxu0
    %v704 = vadd.f32 %v334, %v703
    %v705 = vpop.f32.mrb[0].mxu0
    %v706 = vpop.f32.mrb[0].mxu0
    %707 = vdwg.mxu0
    %708 = vmatprep.subr.bf16.mxu0 %v542
    %709 = vmatpush1.bf16.msra.mxu0 %v541
    %710 = vmatprep.subr.bf16.mxu0 %v546
    %711 = vmatpush1.bf16.msra.mxu0 %v545
    %712 = vmatprep.subr.bf16.mxu0 %v550
    %713 = vmatpush1.bf16.msra.mxu0 %v549
    %714 = vmatprep.subr.bf16.mxu0 %v554
    %715 = vmatpush1.bf16.msra.mxu0 %v553
    %716 = vmatprep.subr.bf16.mxu0 %v558
    %717 = vmatpush1.bf16.msra.mxu0 %v557
    %718 = vmatprep.subr.bf16.mxu0 %v562
    %719 = vmatpush1.bf16.msra.mxu0 %v561
    %720 = vmatprep.subr.bf16.mxu0 %v566
    %721 = vmatpush1.bf16.msra.mxu0 %v565
    %722 = vmatprep.subr.bf16.mxu0 %v570
    %723 = vmatpush1.bf16.msra.mxu0 %v569
    %724 = vmatprep.subr.bf16.mxu0 %v574
    %725 = vmatpush1.bf16.msra.mxu0 %v573
    %726 = vmatprep.subr.bf16.mxu0 %v578
    %727 = vmatpush1.bf16.msra.mxu0 %v577
    %728 = vmatprep.subr.bf16.mxu0 %v582
    %729 = vmatpush1.bf16.msra.mxu0 %v581
    %730 = vmatprep.subr.bf16.mxu0 %v586
    %731 = vmatpush1.bf16.msra.mxu0 %v585
    %732 = vmatprep.subr.bf16.mxu0 %v590
    %733 = vmatpush1.bf16.msra.mxu0 %v589
    %734 = vmatprep.subr.bf16.mxu0 %v594
    %735 = vmatpush1.bf16.msra.mxu0 %v593
    %736 = vmatprep.subr.bf16.mxu0 %v598
    %737 = vmatpush1.bf16.msra.mxu0 %v597
    %738 = vmatprep.subr.bf16.mxu0 %v602
    %739 = vmatpush1.bf16.msra.mxu0 %v601
    %740 = vmatprep.mubr.bf16.mxu0 %v260
    %741 = vmatmul.mubr.bf16.gmra.mrb[0].mxu0 %v259
    %v742 = vpop.f32.mrb[0].mxu0
    %v743 = vadd.f32 %v338, %v742
    %v744 = vpop.f32.mrb[0].mxu0
    %v745 = vadd.f32 %v342, %v744
    %v746 = vpop.f32.mrb[0].mxu0
    %v747 = vpop.f32.mrb[0].mxu0
    %748 = vdwg.mxu0
    %v749 = vmax.f32 %v702, 0.0
    %v750 = vmax.f32 %v704, 0.0
    %v751 = vmax.f32 %v743, 0.0
    %v752 = vmax.f32 %v745, 0.0
    %v753 = vld [vmem:[%s7] sm:$0xff]
    %v754 = vld [vmem:[%s7 + $0x8] sm:$0xff]
    %v755 = vld [vmem:[%s7 + $0x10] sm:$0xff]
    %v756 = vld [vmem:[%s7 + $0x18] sm:$0xff]
    %v757 = vld [vmem:[%s7 + $0x20] sm:$0xff]
    %v758 = vld [vmem:[%s7 + $0x28] sm:$0xff]
    %v759 = vld [vmem:[%s7 + $0x30] sm:$0xff]
    %v760 = vld [vmem:[%s7 + $0x38] sm:$0xff]
    %v761 = vld [vmem:[%s7 + $0x40] sm:$0xff]
    %v762 = vld [vmem:[%s7 + $0x48] sm:$0xff]
    %v763 = vld [vmem:[%s7 + $0x50] sm:$0xff]
    %v764 = vld [vmem:[%s7 + $0x58] sm:$0xff]
    %v765 = vld [vmem:[%s7 + $0x60] sm:$0xff]
    %v766 = vld [vmem:[%s7 + $0x68] sm:$0xff]
    %v767 = vld [vmem:[%s7 + $0x70] sm:$0xff]
    %v768 = vld [vmem:[%s7 + $0x78] sm:$0xff]
    %v769 = vld [vmem:[%s7 + $0x80] sm:$0xff]
    %v770 = vld [vmem:[%s7 + $0x88] sm:$0xff]
    %v771 = vld [vmem:[%s7 + $0x90] sm:$0xff]
    %v772 = vld [vmem:[%s7 + $0x98] sm:$0xff]
    %v773 = vld [vmem:[%s7 + $0xa0] sm:$0xff]
    %v774 = vld [vmem:[%s7 + $0xa8] sm:$0xff]
    %v775 = vld [vmem:[%s7 + $0xb0] sm:$0xff]
    %v776 = vld [vmem:[%s7 + $0xb8] sm:$0xff]
    %v777 = vld [vmem:[%s7 + $0xc0] sm:$0xff]
    %v778 = vld [vmem:[%s7 + $0xc8] sm:$0xff]
    %v779 = vld [vmem:[%s7 + $0xd0] sm:$0xff]
    %v780 = vld [vmem:[%s7 + $0xd8] sm:$0xff]
    %v781 = vld [vmem:[%s7 + $0xe0] sm:$0xff]
    %v782 = vld [vmem:[%s7 + $0xe8] sm:$0xff]
    %v783 = vld [vmem:[%s7 + $0xf0] sm:$0xff]
    %v784 = vld [vmem:[%s7 + $0xf8] sm:$0xff]
    %v785 = vld [vmem:[%s7 + $0x100] sm:$0xff]
    %v786 = vld [vmem:[%s7 + $0x108] sm:$0xff]
    %v787 = vld [vmem:[%s7 + $0x110] sm:$0xff]
    %v788 = vld [vmem:[%s7 + $0x118] sm:$0xff]
    %v789 = vld [vmem:[%s7 + $0x120] sm:$0xff]
    %v790 = vld [vmem:[%s7 + $0x128] sm:$0xff]
    %v791 = vld [vmem:[%s7 + $0x130] sm:$0xff]
    %v792 = vld [vmem:[%s7 + $0x138] sm:$0xff]
    %v793 = vld [vmem:[%s7 + $0x140] sm:$0xff]
    %v794 = vld [vmem:[%s7 + $0x148] sm:$0xff]
    %v795 = vld [vmem:[%s7 + $0x150] sm:$0xff]
    %v796 = vld [vmem:[%s7 + $0x158] sm:$0xff]
    %v797 = vld [vmem:[%s7 + $0x160] sm:$0xff]
    %v798 = vld [vmem:[%s7 + $0x168] sm:$0xff]
    %v799 = vld [vmem:[%s7 + $0x170] sm:$0xff]
    %v800 = vld [vmem:[%s7 + $0x178] sm:$0xff]
    %v801 = vld [vmem:[%s7 + $0x180] sm:$0xff]
    %v802 = vld [vmem:[%s7 + $0x188] sm:$0xff]
    %v803 = vld [vmem:[%s7 + $0x190] sm:$0xff]
    %v804 = vld [vmem:[%s7 + $0x198] sm:$0xff]
    %v805 = vld [vmem:[%s7 + $0x1a0] sm:$0xff]
    %v806 = vld [vmem:[%s7 + $0x1a8] sm:$0xff]
    %v807 = vld [vmem:[%s7 + $0x1b0] sm:$0xff]
    %v808 = vld [vmem:[%s7 + $0x1b8] sm:$0xff]
    %v809 = vld [vmem:[%s7 + $0x1c0] sm:$0xff]
    %v810 = vld [vmem:[%s7 + $0x1c8] sm:$0xff]
    %v811 = vld [vmem:[%s7 + $0x1d0] sm:$0xff]
    %v812 = vld [vmem:[%s7 + $0x1d8] sm:$0xff]
    %v813 = vld [vmem:[%s7 + $0x1e0] sm:$0xff]
    %v814 = vld [vmem:[%s7 + $0x1e8] sm:$0xff]
    %v815 = vld [vmem:[%s7 + $0x1f0] sm:$0xff]
    %v816 = vld [vmem:[%s7 + $0x1f8] sm:$0xff]
    %v817 = vld [vmem:[%s8] sm:$0x1]
    %v819 = vlaneseq
    %v820 = vshrl.u32 %v819, 7
    %v821 = vsub.s32 0, %v820
    %v822 = vrot.slane %v817, %v821
    %824 = vmatprep.subr.mxu0 0.0
    %825 = vmatpush1.msra.mxu0 %v753
    %826 = vmatprep.subr.mxu0 0.0
    %827 = vmatpush1.msra.mxu0 %v754
    %828 = vmatprep.subr.mxu0 0.0
    %829 = vmatpush1.msra.mxu0 %v755
    %830 = vmatprep.subr.mxu0 0.0
    %831 = vmatpush1.msra.mxu0 %v756
    %832 = vmatprep.subr.mxu0 0.0
    %833 = vmatpush1.msra.mxu0 %v757
    %834 = vmatprep.subr.mxu0 0.0
    %835 = vmatpush1.msra.mxu0 %v758
    %836 = vmatprep.subr.mxu0 0.0
    %837 = vmatpush1.msra.mxu0 %v759
    %838 = vmatprep.subr.mxu0 0.0
    %839 = vmatpush1.msra.mxu0 %v760
    %840 = vmatprep.subr.mxu0 0.0
    %841 = vmatpush1.msra.mxu0 %v761
    %842 = vmatprep.subr.mxu0 0.0
    %843 = vmatpush1.msra.mxu0 %v762
    %844 = vmatprep.subr.mxu0 0.0
    %845 = vmatpush1.msra.mxu0 %v763
    %846 = vmatprep.subr.mxu0 0.0
    %847 = vmatpush1.msra.mxu0 %v764
    %848 = vmatprep.subr.mxu0 0.0
    %849 = vmatpush1.msra.mxu0 %v765
    %850 = vmatprep.subr.mxu0 0.0
    %851 = vmatpush1.msra.mxu0 %v766
    %852 = vmatprep.subr.mxu0 0.0
    %853 = vmatpush1.msra.mxu0 %v767
    %854 = vmatprep.subr.mxu0 0.0
    %855 = vmatpush1.msra.mxu0 %v768
    %856 = vmatprep.subr.mxu0 0.0
    %857 = vmatpush1.msra.mxu0 %v769
    %858 = vmatprep.subr.mxu0 0.0
    %859 = vmatpush1.msra.mxu0 %v770
    %860 = vmatprep.subr.mxu0 0.0
    %861 = vmatpush1.msra.mxu0 %v771
    %862 = vmatprep.subr.mxu0 0.0
    %863 = vmatpush1.msra.mxu0 %v772
    %864 = vmatprep.subr.mxu0 0.0
    %865 = vmatpush1.msra.mxu0 %v773
    %866 = vmatprep.subr.mxu0 0.0
    %867 = vmatpush1.msra.mxu0 %v774
    %868 = vmatprep.subr.mxu0 0.0
    %869 = vmatpush1.msra.mxu0 %v775
    %870 = vmatprep.subr.mxu0 0.0
    %871 = vmatpush1.msra.mxu0 %v776
    %872 = vmatprep.subr.mxu0 0.0
    %873 = vmatpush1.msra.mxu0 %v777
    %874 = vmatprep.subr.mxu0 0.0
    %875 = vmatpush1.msra.mxu0 %v778
    %876 = vmatprep.subr.mxu0 0.0
    %877 = vmatpush1.msra.mxu0 %v779
    %878 = vmatprep.subr.mxu0 0.0
    %879 = vmatpush1.msra.mxu0 %v780
    %880 = vmatprep.subr.mxu0 0.0
    %881 = vmatpush1.msra.mxu0 %v781
    %882 = vmatprep.subr.mxu0 0.0
    %883 = vmatpush1.msra.mxu0 %v782
    %884 = vmatprep.subr.mxu0 0.0
    %885 = vmatpush1.msra.mxu0 %v783
    %886 = vmatprep.subr.mxu0 0.0
    %887 = vmatpush1.msra.mxu0 %v784
    %888 = vmatprep.mubr.f32.mxu0 %v750
    %889 = vmatmul.mubr.f32.gmra.mrb[0].mxu0 %v749
    %v890 = vpop.f32.mrb[0].mxu0
    %v891 = vadd.f32 %v822, %v890
    %v892 = vpop.f32.mrb[0].mxu0
    %893 = vdwg.mxu0
    %894 = vmatprep.subr.mxu0 0.0
    %895 = vmatpush1.msra.mxu0 %v785
    %896 = vmatprep.subr.mxu0 0.0
    %897 = vmatpush1.msra.mxu0 %v786
    %898 = vmatprep.subr.mxu0 0.0
    %899 = vmatpush1.msra.mxu0 %v787
    %900 = vmatprep.subr.mxu0 0.0
    %901 = vmatpush1.msra.mxu0 %v788
    %902 = vmatprep.subr.mxu0 0.0
    %903 = vmatpush1.msra.mxu0 %v789
    %904 = vmatprep.subr.mxu0 0.0
    %905 = vmatpush1.msra.mxu0 %v790
    %906 = vmatprep.subr.mxu0 0.0
    %907 = vmatpush1.msra.mxu0 %v791
    %908 = vmatprep.subr.mxu0 0.0
    %909 = vmatpush1.msra.mxu0 %v792
    %910 = vmatprep.subr.mxu0 0.0
    %911 = vmatpush1.msra.mxu0 %v793
    %912 = vmatprep.subr.mxu0 0.0
    %913 = vmatpush1.msra.mxu0 %v794
    %914 = vmatprep.subr.mxu0 0.0
    %915 = vmatpush1.msra.mxu0 %v795
    %916 = vmatprep.subr.mxu0 0.0
    %917 = vmatpush1.msra.mxu0 %v796
    %918 = vmatprep.subr.mxu0 0.0
    %919 = vmatpush1.msra.mxu0 %v797
    %920 = vmatprep.subr.mxu0 0.0
    %921 = vmatpush1.msra.mxu0 %v798
    %922 = vmatprep.subr.mxu0 0.0
    %923 = vmatpush1.msra.mxu0 %v799
    %924 = vmatprep.subr.mxu0 0.0
    %925 = vmatpush1.msra.mxu0 %v800
    %926 = vmatprep.subr.mxu0 0.0
    %927 = vmatpush1.msra.mxu0 %v801
    %928 = vmatprep.subr.mxu0 0.0
    %929 = vmatpush1.msra.mxu0 %v802
    %930 = vmatprep.subr.mxu0 0.0
    %931 = vmatpush1.msra.mxu0 %v803
    %932 = vmatprep.subr.mxu0 0.0
    %933 = vmatpush1.msra.mxu0 %v804
    %934 = vmatprep.subr.mxu0 0.0
    %935 = vmatpush1.msra.mxu0 %v805
    %936 = vmatprep.subr.mxu0 0.0
    %937 = vmatpush1.msra.mxu0 %v806
    %938 = vmatprep.subr.mxu0 0.0
    %939 = vmatpush1.msra.mxu0 %v807
    %940 = vmatprep.subr.mxu0 0.0
    %941 = vmatpush1.msra.mxu0 %v808
    %942 = vmatprep.subr.mxu0 0.0
    %943 = vmatpush1.msra.mxu0 %v809
    %944 = vmatprep.subr.mxu0 0.0
    %945 = vmatpush1.msra.mxu0 %v810
    %946 = vmatprep.subr.mxu0 0.0
    %947 = vmatpush1.msra.mxu0 %v811
    %948 = vmatprep.subr.mxu0 0.0
    %949 = vmatpush1.msra.mxu0 %v812
    %950 = vmatprep.subr.mxu0 0.0
    %951 = vmatpush1.msra.mxu0 %v813
    %952 = vmatprep.subr.mxu0 0.0
    %953 = vmatpush1.msra.mxu0 %v814
    %954 = vmatprep.subr.mxu0 0.0
    %955 = vmatpush1.msra.mxu0 %v815
    %956 = vmatprep.subr.mxu0 0.0
    %957 = vmatpush1.msra.mxu0 %v816
    %958 = vmatprep.mubr.f32.mxu0 %v752
    %959 = vmatmul.mubr.f32.gmra.mrb[0].mxu0 %v751
    %v960 = vpop.f32.mrb[0].mxu0
    %v961 = vadd.f32 %v891, %v960
    %v962 = vpop.f32.mrb[0].mxu0
    %963 = vdwg.mxu0
    %vm964 = vcmask 9216
    %965 = vst.msk [vmem:[#allocation5] sm:$0x3] %vm964, %v961
    // Predicated region
    $region42: #{network0_forward.1} parent=1 // pred_check
      _
    $region43: #{network0_forward.1} parent=1 // pred_check_branch
      %967 = sbr.rel (0) target = $region45
    $region44: #{network0_forward.1} parent=1 // pred_region
      %s969 = ssub.s32 32, 32
      %970 = vsyncadd [#allocation4], %s969
      %s972 = sshll.u32 [#allocation5], 4
      %s973 = int_to_ptr.vmem [resolvable:$true] %s972
      %975 = dma.vmem_to_hbm [thread:$0]  %s973, 32, %s9, [#allocation4]
    $region45: #{network0_forward.1} parent=1 // pred_fallthru
      _
    // Predicated region
    $region46: #{network0_forward.1} parent=1 // pred_check
      _
    $region47: #{network0_forward.1} parent=1 // pred_check_branch
      %977 = sbr.rel (0) target = $region49
    $region48: #{network0_forward.1} parent=1 // pred_region
      %978 = dma.done [#allocation4], 32
    $region49: #{network0_forward.1} parent=1 // pred_fallthru
      _
    %979 = vsyncpa [#allocation3], 1
    %980 = vsyncpa [#allocation4], 1

</llo_original>
